<compile_context>
chip_gen: v5e
topology: v5e:2x2
jax: 0.10.0
libtpu: 0.0.40
codegen_flags: <defaults>
</compile_context>

<pallas_src>
import functools

import jax
import jax.numpy as jnp
from jax.experimental import pallas as pl
from jax.experimental.pallas import tpu as pltpu

LANE = 128
SUBLANE = 8


def _round_up(x, m):
    return ((x + m - 1) // m) * m


def retrieval_kernel(scale_ref, labels_ref, ids_ref, w_text_ref, tbl_ref,
                     img_ref, w_img_ref,
                     logits_ref, loss_ref,
                     c_sc, img_sc, m_sc, l_sc, ll_sc,
                     *, num_pairs, valid_batch, a_pad, bias_row):
    p = pl.program_id(0)
    n_p = pl.num_programs(0)
    bp, tp = logits_ref.shape
    cdt = c_sc.dtype

    # ---- one-time prep (grid step 0): tiny reassociated projections ---------
    @pl.when(p == 0)
    def _init():
        # C[:, r] = text_projection(attr/obj embedding row r); C[:, bias_row]
        # = b_text.  One MXU call: (Dout, Kext) @ (Kext, A+O+1 padded).
        c_sc[...] = jnp.dot(w_text_ref[...], tbl_ref[...],
                            preferred_element_type=jnp.float32).astype(cdt)
        # Image projection (b_img folded in via the ones column); logit_scale
        # folded in here so we scale B*Dout elements instead of B*P logits.
        scale = scale_ref[0, 0]
        img_sc[...] = (scale * jnp.dot(img_ref[...], w_img_ref[...],
                                       preferred_element_type=jnp.float32)
                       ).astype(cdt)
        m_sc[...] = jnp.full(m_sc.shape, -jnp.inf, m_sc.dtype)
        l_sc[...] = jnp.zeros(l_sc.shape, l_sc.dtype)
        ll_sc[...] = jnp.zeros(ll_sc.shape, ll_sc.dtype)

    # ---- transposed (attr | obj | bias) one-hot, pairs on lanes -------------
    ao_tot = c_sc.shape[1]
    row = jax.lax.broadcasted_iota(jnp.int32, (ao_tot, tp), 0)
    attr_ids = ids_ref[0:1, :]                       # (1, TP) lane-major
    obj_ids = ids_ref[1:2, :]
    onehot_t = ((row == attr_ids) | (row == obj_ids + a_pad)
                | (row == bias_row)).astype(cdt)

    # ---- pair projection, transposed (Dout, TP): gather + bias via the MXU --
    pair_proj_t = jnp.dot(c_sc[...], onehot_t,
                          preferred_element_type=jnp.float32).astype(cdt)

    # ---- logits tile: canonical (B, Dout) @ (Dout, TP) ----------------------
    logits = jnp.dot(img_sc[...], pair_proj_t,
                     preferred_element_type=jnp.float32)
    logits_ref[...] = logits

    # ---- online logsumexp + label-logit accumulation (f32) ------------------
    # TODO(synk): on v6e/v7x the exp could run in bf16 to relieve the EUP slot.
    col = p * tp + jax.lax.broadcasted_iota(jnp.int32, (bp, tp), 1)
    masked = jnp.where(col < num_pairs, logits, -jnp.inf)
    m_prev = m_sc[...]
    m_new = jnp.maximum(m_prev, jnp.max(masked, axis=-1, keepdims=True))
    alpha = jnp.exp(m_prev - m_new)
    l_sc[...] = alpha * l_sc[...] + jnp.sum(jnp.exp(masked - m_new),
                                            axis=-1, keepdims=True)
    m_sc[...] = m_new
    # NOTE: labels are assumed in [0, num_pairs); out-of-range labels silently
    # contribute 0 here (PyTorch CrossEntropyLoss would raise instead).
    hit = col == labels_ref[...]
    ll_sc[...] = ll_sc[...] + jnp.sum(jnp.where(hit, logits, 0.0),
                                      axis=-1, keepdims=True)

    # ---- finalize: mean CE over the TRUE batch (padded rows masked) ---------
    @pl.when(p == n_p - 1)
    def _finalize():
        per_example = m_sc[...] + jnp.log(l_sc[...]) - ll_sc[...]   # (Bp, 1)
        brow = jax.lax.broadcasted_iota(jnp.int32, per_example.shape, 0)
        valid = brow < valid_batch
        loss_ref[0, 0] = (jnp.sum(jnp.where(valid, per_example, 0.0))
                          * (1.0 / valid_batch))


@functools.partial(jax.jit, static_argnames=("compute_dtype", "pair_tile"))
def retrieval_forward(image_embs, pair_labels, attr_ids, obj_ids,
                      attr_table, obj_table, w_text, b_text, w_img, b_img,
                      logit_scale_param, *, compute_dtype=jnp.bfloat16,
                      pair_tile=128):
    """Fused RetrievalModel.forward (is_train=True) -> (logits, loss)."""
    f32 = jnp.float32
    cdt = compute_dtype

    b, image_dim = image_embs.shape
    num_attrs, input_dim = attr_table.shape
    num_objs = obj_table.shape[0]
    output_dim = w_text.shape[1]
    num_pairs = attr_ids.shape[0]

    tp = pair_tile
    p_pad = _round_up(num_pairs, tp)
    b_pad = _round_up(b, SUBLANE)
    din_pad = _round_up(input_dim, LANE)
    dout_pad = _round_up(output_dim, LANE)
    a_pad = _round_up(num_attrs, SUBLANE)
    o_pad = _round_up(num_objs, SUBLANE)
    bias_row = a_pad + o_pad
    ao_tot = _round_up(bias_row + 1, LANE)
    k_ext = _round_up(2 * din_pad + 1, LANE)
    dimg_ext = _round_up(image_dim + 1, LANE)

    # logit_scale.exp(), clamped at 100 (scalar glue; lives in SMEM).
    scale = jnp.minimum(jnp.exp(logit_scale_param), 100.0)
    scale = jnp.reshape(scale, (1, 1)).astype(f32)

    # --- one-time parameter packing (layout plumbing, done once per params) --
    # text side: W_ext^T = [w_attr^T | w_obj^T | b_text | 0]   (Dout, Kext)
    w_ext_t = jnp.zeros((dout_pad, k_ext), f32)
    w_ext_t = w_ext_t.at[:output_dim, :input_dim].set(w_text[:input_dim].T)
    w_ext_t = w_ext_t.at[:output_dim, din_pad:din_pad + input_dim].set(
        w_text[input_dim:].T)
    w_ext_t = w_ext_t.at[:output_dim, 2 * din_pad].set(b_text[0])
    # block-diagonal stacked embedding tables (transposed) + bias hook
    t_ext_t = jnp.zeros((k_ext, ao_tot), f32)
    t_ext_t = t_ext_t.at[:input_dim, :num_attrs].set(attr_table.T)
    t_ext_t = t_ext_t.at[din_pad:din_pad + input_dim,
                         a_pad:a_pad + num_objs].set(obj_table.T)
    t_ext_t = t_ext_t.at[2 * din_pad, bias_row].set(1.0)
    # image side: ones column folds b_img into the single image matmul
    img_ext = jnp.zeros((b_pad, dimg_ext), f32)
    img_ext = img_ext.at[:b, :image_dim].set(image_embs.astype(f32))
    img_ext = img_ext.at[:, image_dim].set(1.0)
    w_img_ext = jnp.zeros((dimg_ext, dout_pad), f32)
    w_img_ext = w_img_ext.at[:image_dim, :output_dim].set(w_img)
    w_img_ext = w_img_ext.at[image_dim, :output_dim].set(b_img[0])
    # pair ids, lane-major (2, P_pad); labels (B_pad, 1)
    ids = jnp.zeros((2, p_pad), jnp.int32)
    ids = ids.at[0, :num_pairs].set(attr_ids.astype(jnp.int32))
    ids = ids.at[1, :num_pairs].set(obj_ids.astype(jnp.int32))
    labels = jnp.zeros((b_pad, 1), jnp.int32)
    labels = labels.at[:b, 0].set(pair_labels.astype(jnp.int32))

    kernel = functools.partial(retrieval_kernel, num_pairs=num_pairs,
                               valid_batch=b, a_pad=a_pad, bias_row=bias_row)
    vmem = pl.BlockSpec(memory_space=pltpu.MemorySpace.VMEM)
    smem = pl.BlockSpec(memory_space=pltpu.MemorySpace.SMEM)

    # TODO(synk): add a "parallel" batch grid axis (with per-block partial loss
    # outputs) so v7x's second TensorCore shares the work at production sizes.
    logits_pad, loss = pl.pallas_call(
        kernel,
        out_shape=(jax.ShapeDtypeStruct((b_pad, p_pad), f32),
                   jax.ShapeDtypeStruct((1, 1), f32)),
        grid_spec=pltpu.PrefetchScalarGridSpec(
            num_scalar_prefetch=0,
            grid=(p_pad // tp,),
            in_specs=[
                smem,                                      # scale (1,1)
                vmem,                                      # labels (Bp,1)
                pl.BlockSpec((2, tp), lambda i: (0, i)),   # pair ids tile
                vmem,                                      # packed text weight
                vmem,                                      # packed tables
                vmem,                                      # image (+ones col)
                vmem,                                      # image weight+bias
            ],
            out_specs=(pl.BlockSpec((b_pad, tp), lambda i: (0, i)),  # logits
                       smem),                                        # loss
            scratch_shapes=[
                pltpu.VMEM((dout_pad, ao_tot), cdt),   # C = tables @ W_text
                pltpu.VMEM((b_pad, dout_pad), cdt),    # scaled img_proj
                pltpu.VMEM((b_pad, 1), f32),           # running max
                pltpu.VMEM((b_pad, 1), f32),           # running sum-exp
                pltpu.VMEM((b_pad, 1), f32),           # label logit
            ]),
        compiler_params=pltpu.CompilerParams(
            dimension_semantics=("arbitrary",),
            vmem_limit_bytes=32 * 1024 * 1024),
    )(scale, labels, ids, w_ext_t.astype(cdt), t_ext_t.astype(cdt),
      img_ext.astype(cdt), w_img_ext.astype(cdt))

    # Drop padded phantom rows / pair columns before returning to the caller.
    return logits_pad[:b, :num_pairs], loss[0, 0]


if __name__ == "__main__":
    key = jax.random.PRNGKey(0)
    ks = jax.random.split(key, 8)

    # Small, forward-consistent shapes.
    num_attrs = 6
    num_objs = 5
    input_dim = 32        # args.input_dim
    output_dim = 64       # args.output_dim
    image_dim = 48        # self.image_dim
    B = 8                 # batch of image embeddings
    P = 300               # (attr, obj) limit pairs -> 3 grid steps, last ragged
    logit_scale_arg = 0.07

    # --- deterministic parameter init (shapes from __init__) ---
    attr_table = jax.random.normal(ks[0], (num_attrs, input_dim), jnp.float32)
    obj_table = jax.random.normal(ks[1], (num_objs, input_dim), jnp.float32)
    w_text = jax.random.normal(ks[2], (2 * input_dim, output_dim),
                               jnp.float32) * 0.05
    b_text = jax.random.normal(ks[3], (1, output_dim), jnp.float32) * 0.01
    w_img = jax.random.normal(ks[4], (image_dim, output_dim),
                              jnp.float32) * 0.05
    b_img = jax.random.normal(ks[5], (1, output_dim), jnp.float32) * 0.01
    logit_scale_param = jnp.asarray(jnp.log(1.0 / logit_scale_arg), jnp.float32)

    # --- forward inputs ---
    image_embs = jax.random.normal(ks[6], (B, image_dim), jnp.float32)
    pair_labels = jax.random.randint(ks[7], (B,), 0, P, jnp.int32)

    # get_limit_pair_inputs (host-side id lookup)
    attr_ids = jnp.arange(P, dtype=jnp.int32) % num_attrs
    obj_ids = jnp.arange(P, dtype=jnp.int32) % num_objs

    args = (image_embs, pair_labels, attr_ids, obj_ids, attr_table, obj_table,
            w_text, b_text, w_img, b_img, logit_scale_param)

    logits32, loss32 = retrieval_forward(*args, compute_dtype=jnp.float32)
    logits16, loss16 = retrieval_forward(*args, compute_dtype=jnp.bfloat16)
    jax.block_until_ready((logits32, loss32, logits16, loss16))

    # --- pure-JAX reference (mirrors the PyTorch forward) --------------------
    hi = jax.lax.Precision.HIGHEST
    pair_in = jnp.concatenate([attr_table[attr_ids], obj_table[obj_ids]], axis=1)
    pair_proj_ref = jnp.dot(pair_in, w_text, precision=hi) + b_text
    img_proj_ref = jnp.dot(image_embs, w_img, precision=hi) + b_img
    scale_val = jnp.minimum(jnp.exp(logit_scale_param), 100.0)
    logits_ref = scale_val * jnp.dot(img_proj_ref, pair_proj_ref.T, precision=hi)
    lse_ref = jax.scipy.special.logsumexp(logits_ref, axis=-1)
    label_logit_ref = logits_ref[jnp.arange(B), pair_labels]
    loss_ref = jnp.mean(lse_ref - label_logit_ref)

    assert logits32.shape == (B, P) and logits16.shape == (B, P)
    assert bool(jnp.isfinite(loss32)) and bool(jnp.isfinite(loss16))
    assert bool(jnp.allclose(logits32, logits_ref, rtol=1e-2, atol=1e-2))
    assert bool(jnp.allclose(loss32, loss_ref, rtol=1e-2, atol=1e-2))
    assert bool(jnp.allclose(logits16, logits_ref, rtol=5e-2, atol=5e-1))
    assert bool(jnp.allclose(loss16, loss_ref, rtol=5e-2, atol=3e-1))
    print("KERNEL_OK")
</pallas_src>

<mosaic_0001>
module attributes {stable_mosaic.version = 11 : i64} {
  func.func @retrieval_kernel(%arg0: i32, %arg1: memref<1x1xf32, #tpu.memory_space<smem>>, %arg2: memref<8x1xi32, #tpu.memory_space<vmem>>, %arg3: memref<2x128xi32, #tpu.memory_space<vmem>>, %arg4: memref<128x384xf32, #tpu.memory_space<vmem>>, %arg5: memref<384x128xf32, #tpu.memory_space<vmem>>, %arg6: memref<8x128xf32, #tpu.memory_space<vmem>>, %arg7: memref<128x128xf32, #tpu.memory_space<vmem>>, %arg8: memref<8x128xf32, #tpu.memory_space<vmem>>, %arg9: memref<1x1xf32, #tpu.memory_space<smem>>, %arg10: memref<128x128xf32, #tpu.memory_space<vmem>>, %arg11: memref<8x128xf32, #tpu.memory_space<vmem>>, %arg12: memref<8x1xf32, #tpu.memory_space<vmem>>, %arg13: memref<8x1xf32, #tpu.memory_space<vmem>>, %arg14: memref<8x1xf32, #tpu.memory_space<vmem>>) attributes {dimension_semantics = [#tpu.dimension_semantics<arbitrary>], iteration_bounds = array<i64: 3>, scalar_prefetch = 0 : i64, scratch_operands = 5 : i64, tpu.core_type = #tpu.core_type<tc>, window_params = [{transform_indices = @transform_0, window_bounds = array<i64: 1, 1>}, {pipeline_mode = #tpu.pipeline_mode<synchronous>, transform_indices = @transform_1, window_bounds = array<i64: 8, 1>}, {transform_indices = @transform_2, window_bounds = array<i64: 2, 128>}, {pipeline_mode = #tpu.pipeline_mode<synchronous>, transform_indices = @transform_3, window_bounds = array<i64: 128, 384>}, {pipeline_mode = #tpu.pipeline_mode<synchronous>, transform_indices = @transform_4, window_bounds = array<i64: 384, 128>}, {pipeline_mode = #tpu.pipeline_mode<synchronous>, transform_indices = @transform_5, window_bounds = array<i64: 8, 128>}, {pipeline_mode = #tpu.pipeline_mode<synchronous>, transform_indices = @transform_6, window_bounds = array<i64: 128, 128>}, {transform_indices = @transform_7, window_bounds = array<i64: 8, 128>}, {transform_indices = @transform_8, window_bounds = array<i64: 1, 1>}]} {
    %c0_i32 = arith.constant 0 : i32
    %0 = arith.cmpi eq, %arg0, %c0_i32 : i32
    %1 = arith.extui %0 : i1 to i32
    %c0_i32_0 = arith.constant 0 : i32
    %2 = arith.cmpi ne, %1, %c0_i32_0 : i32
    scf.if %2 {
      %c0_30 = arith.constant 0 : index
      %c0_31 = arith.constant 0 : index
      %60 = vector.load %arg4[%c0_30, %c0_31] : memref<128x384xf32, #tpu.memory_space<vmem>>, vector<128x384xf32>
      %c0_32 = arith.constant 0 : index
      %c0_33 = arith.constant 0 : index
      %61 = vector.load %arg5[%c0_32, %c0_33] : memref<384x128xf32, #tpu.memory_space<vmem>>, vector<384x128xf32>
      %cst_34 = arith.constant dense<0.000000e+00> : vector<128x128xf32>
      %62 = tpu.matmul %60, %61, %cst_34 {dimension_numbers = #tpu.dot_dimension_numbers<[1], [0], [0], [1], [0, 0, 1, 1], [], []>} : vector<128x384xf32>, vector<384x128xf32>, vector<128x128xf32> -> vector<128x128xf32>
      %c0_35 = arith.constant 0 : index
      %c0_36 = arith.constant 0 : index
      %63 = vector.load %arg10[%c0_35, %c0_36] : memref<128x128xf32, #tpu.memory_space<vmem>>, vector<128x128xf32>
      tpu.vector_store %arg10[%c0_35, %c0_36], %62 {strides = array<i32>} : memref<128x128xf32, #tpu.memory_space<vmem>>, vector<128x128xf32>,
      %c0_37 = arith.constant 0 : index
      %c0_38 = arith.constant 0 : index
      %64 = memref.load %arg1[%c0_37, %c0_38] : memref<1x1xf32, #tpu.memory_space<smem>>
      %c0_39 = arith.constant 0 : index
      %c0_40 = arith.constant 0 : index
      %65 = vector.load %arg6[%c0_39, %c0_40] : memref<8x128xf32, #tpu.memory_space<vmem>>, vector<8x128xf32>
      %c0_41 = arith.constant 0 : index
      %c0_42 = arith.constant 0 : index
      %66 = vector.load %arg7[%c0_41, %c0_42] : memref<128x128xf32, #tpu.memory_space<vmem>>, vector<128x128xf32>
      %cst_43 = arith.constant dense<0.000000e+00> : vector<8x128xf32>
      %67 = tpu.matmul %65, %66, %cst_43 {dimension_numbers = #tpu.dot_dimension_numbers<[1], [0], [0], [1], [0, 0, 1, 1], [], []>} : vector<8x128xf32>, vector<128x128xf32>, vector<8x128xf32> -> vector<8x128xf32>
      %68 = vector.broadcast %64 : f32 to vector<8x128xf32>
      %69 = arith.mulf %68, %67 : vector<8x128xf32>
      %c0_44 = arith.constant 0 : index
      %c0_45 = arith.constant 0 : index
      %70 = vector.load %arg11[%c0_44, %c0_45] : memref<8x128xf32, #tpu.memory_space<vmem>>, vector<8x128xf32>
      tpu.vector_store %arg11[%c0_44, %c0_45], %69 {strides = array<i32>} : memref<8x128xf32, #tpu.memory_space<vmem>>, vector<8x128xf32>,
      %cst_46 = arith.constant 0xFF800000 : f32
      %71 = vector.broadcast %cst_46 : f32 to vector<8x1xf32>
      %c0_47 = arith.constant 0 : index
      %c0_48 = arith.constant 0 : index
      %72 = vector.load %arg12[%c0_47, %c0_48] : memref<8x1xf32, #tpu.memory_space<vmem>>, vector<8x1xf32>
      tpu.vector_store %arg12[%c0_47, %c0_48], %71 {strides = array<i32>} : memref<8x1xf32, #tpu.memory_space<vmem>>, vector<8x1xf32>,
      %cst_49 = arith.constant 0.000000e+00 : f32
      %73 = vector.broadcast %cst_49 : f32 to vector<8x1xf32>
      %c0_50 = arith.constant 0 : index
      %c0_51 = arith.constant 0 : index
      %74 = vector.load %arg13[%c0_50, %c0_51] : memref<8x1xf32, #tpu.memory_space<vmem>>, vector<8x1xf32>
      tpu.vector_store %arg13[%c0_50, %c0_51], %73 {strides = array<i32>} : memref<8x1xf32, #tpu.memory_space<vmem>>, vector<8x1xf32>,
      %cst_52 = arith.constant 0.000000e+00 : f32
      %75 = vector.broadcast %cst_52 : f32 to vector<8x1xf32>
      %c0_53 = arith.constant 0 : index
      %c0_54 = arith.constant 0 : index
      %76 = vector.load %arg14[%c0_53, %c0_54] : memref<8x1xf32, #tpu.memory_space<vmem>>, vector<8x1xf32>
      tpu.vector_store %arg14[%c0_53, %c0_54], %75 {strides = array<i32>} : memref<8x1xf32, #tpu.memory_space<vmem>>, vector<8x1xf32>,
    } else {
    }
    %3 = tpu.iota {dimensions = array<i32: 0>} : vector<128x128xi32>
    %c0 = arith.constant 0 : index
    %c0_1 = arith.constant 0 : index
    %4 = vector.load %arg3[%c0, %c0_1] : memref<2x128xi32, #tpu.memory_space<vmem>>, vector<1x128xi32>
    %c1 = arith.constant 1 : index
    %c0_2 = arith.constant 0 : index
    %5 = vector.load %arg3[%c1, %c0_2] : memref<2x128xi32, #tpu.memory_space<vmem>>, vector<1x128xi32>
    %6 = vector.broadcast %4 : vector<1x128xi32> to vector<128x128xi32>
    %7 = arith.cmpi eq, %3, %6 : vector<128x128xi32>
    %c8_i32 = arith.constant 8 : i32
    %8 = vector.broadcast %c8_i32 : i32 to vector<1x128xi32>
    %9 = arith.addi %5, %8 : vector<1x128xi32>
    %10 = vector.broadcast %9 : vector<1x128xi32> to vector<128x128xi32>
    %11 = arith.cmpi eq, %3, %10 : vector<128x128xi32>
    %12 = arith.ori %7, %11 : vector<128x128xi1>
    %c16_i32 = arith.constant 16 : i32
    %13 = vector.broadcast %c16_i32 : i32 to vector<128x128xi32>
    %14 = arith.cmpi eq, %3, %13 : vector<128x128xi32>
    %15 = arith.ori %12, %14 : vector<128x128xi1>
    %16 = arith.extui %15 : vector<128x128xi1> to vector<128x128xi32>
    %17 = arith.sitofp %16 : vector<128x128xi32> to vector<128x128xf32>
    %c0_3 = arith.constant 0 : index
    %c0_4 = arith.constant 0 : index
    %18 = vector.load %arg10[%c0_3, %c0_4] : memref<128x128xf32, #tpu.memory_space<vmem>>, vector<128x128xf32>
    %cst = arith.constant dense<0.000000e+00> : vector<128x128xf32>
    %19 = tpu.matmul %18, %17, %cst {dimension_numbers = #tpu.dot_dimension_numbers<[1], [0], [0], [1], [0, 0, 1, 1], [], []>} : vector<128x128xf32>, vector<128x128xf32>, vector<128x128xf32> -> vector<128x128xf32>
    %c0_5 = arith.constant 0 : index
    %c0_6 = arith.constant 0 : index
    %20 = vector.load %arg11[%c0_5, %c0_6] : memref<8x128xf32, #tpu.memory_space<vmem>>, vector<8x128xf32>
    %cst_7 = arith.constant dense<0.000000e+00> : vector<8x128xf32>
    %21 = tpu.matmul %20, %19, %cst_7 {dimension_numbers = #tpu.dot_dimension_numbers<[1], [0], [0], [1], [0, 0, 1, 1], [], []>} : vector<8x128xf32>, vector<128x128xf32>, vector<8x128xf32> -> vector<8x128xf32>
    %c0_8 = arith.constant 0 : index
    %c0_9 = arith.constant 0 : index
    %22 = vector.load %arg8[%c0_8, %c0_9] : memref<8x128xf32, #tpu.memory_space<vmem>>, vector<8x128xf32>
    tpu.vector_store %arg8[%c0_8, %c0_9], %21 {strides = array<i32>} : memref<8x128xf32, #tpu.memory_space<vmem>>, vector<8x128xf32>,
    %c128_i32 = arith.constant 128 : i32
    %23 = arith.muli %arg0, %c128_i32 : i32
    %24 = tpu.iota {dimensions = array<i32: 1>} : vector<8x128xi32>
    %25 = vector.broadcast %23 : i32 to vector<8x128xi32>
    %26 = arith.addi %25, %24 : vector<8x128xi32>
    %c300_i32 = arith.constant 300 : i32
    %27 = vector.broadcast %c300_i32 : i32 to vector<8x128xi32>
    %28 = arith.cmpi slt, %26, %27 : vector<8x128xi32>
    %cst_10 = arith.constant 0xFF800000 : f32
    %29 = vector.broadcast %cst_10 : f32 to vector<8x128xf32>
    %30 = arith.select %28, %21, %29 : vector<8x128xi1>, vector<8x128xf32>
    %c0_11 = arith.constant 0 : index
    %c0_12 = arith.constant 0 : index
    %31 = vector.load %arg12[%c0_11, %c0_12] : memref<8x1xf32, #tpu.memory_space<vmem>>, vector<8x1xf32>
    %cst_13 = arith.constant dense<0xFF800000> : vector<8xf32>
    %32 = vector.multi_reduction <maximumf>, %30, %cst_13 [1] : vector<8x128xf32> to vector<8xf32>
    %33 = vector.shape_cast %32 : vector<8xf32> to vector<8x1xf32>
    %34 = arith.maximumf %31, %33 : vector<8x1xf32>
    %35 = arith.subf %31, %34 : vector<8x1xf32>
    %36 = math.exp %35 : vector<8x1xf32>
    %c0_14 = arith.constant 0 : index
    %c0_15 = arith.constant 0 : index
    %37 = vector.load %arg13[%c0_14, %c0_15] : memref<8x1xf32, #tpu.memory_space<vmem>>, vector<8x1xf32>
    %38 = arith.mulf %36, %37 : vector<8x1xf32>
    %39 = vector.broadcast %34 : vector<8x1xf32> to vector<8x128xf32>
    %40 = arith.subf %30, %39 : vector<8x128xf32>
    %41 = math.exp %40 : vector<8x128xf32>
    %cst_16 = arith.constant dense<0.000000e+00> : vector<8xf32>
    %42 = vector.multi_reduction <add>, %41, %cst_16 [1] : vector<8x128xf32> to vector<8xf32>
    %43 = vector.shape_cast %42 : vector<8xf32> to vector<8x1xf32>
    %44 = arith.addf %38, %43 : vector<8x1xf32>
    %c0_17 = arith.constant 0 : index
    %c0_18 = arith.constant 0 : index
    %45 = vector.load %arg13[%c0_17, %c0_18] : memref<8x1xf32, #tpu.memory_space<vmem>>, vector<8x1xf32>
    tpu.vector_store %arg13[%c0_17, %c0_18], %44 {strides = array<i32>} : memref<8x1xf32, #tpu.memory_space<vmem>>, vector<8x1xf32>,
    %c0_19 = arith.constant 0 : index
    %c0_20 = arith.constant 0 : index
    %46 = vector.load %arg12[%c0_19, %c0_20] : memref<8x1xf32, #tpu.memory_space<vmem>>, vector<8x1xf32>
    tpu.vector_store %arg12[%c0_19, %c0_20], %34 {strides = array<i32>} : memref<8x1xf32, #tpu.memory_space<vmem>>, vector<8x1xf32>,
    %c0_21 = arith.constant 0 : index
    %c0_22 = arith.constant 0 : index
    %47 = vector.load %arg2[%c0_21, %c0_22] : memref<8x1xi32, #tpu.memory_space<vmem>>, vector<8x1xi32>
    %48 = vector.broadcast %47 : vector<8x1xi32> to vector<8x128xi32>
    %49 = arith.cmpi eq, %26, %48 : vector<8x128xi32>
    %c0_23 = arith.constant 0 : index
    %c0_24 = arith.constant 0 : index
    %50 = vector.load %arg14[%c0_23, %c0_24] : memref<8x1xf32, #tpu.memory_space<vmem>>, vector<8x1xf32>
    %cst_25 = arith.constant 0.000000e+00 : f32
    %51 = vector.broadcast %cst_25 : f32 to vector<8x128xf32>
    %52 = arith.select %49, %21, %51 : vector<8x128xi1>, vector<8x128xf32>
    %cst_26 = arith.constant dense<0.000000e+00> : vector<8xf32>
    %53 = vector.multi_reduction <add>, %52, %cst_26 [1] : vector<8x128xf32> to vector<8xf32>
    %54 = vector.shape_cast %53 : vector<8xf32> to vector<8x1xf32>
    %55 = arith.addf %50, %54 : vector<8x1xf32>
    %c0_27 = arith.constant 0 : index
    %c0_28 = arith.constant 0 : index
    %56 = vector.load %arg14[%c0_27, %c0_28] : memref<8x1xf32, #tpu.memory_space<vmem>>, vector<8x1xf32>
    tpu.vector_store %arg14[%c0_27, %c0_28], %55 {strides = array<i32>} : memref<8x1xf32, #tpu.memory_space<vmem>>, vector<8x1xf32>,
    %c2_i32 = arith.constant 2 : i32
    %57 = arith.cmpi eq, %arg0, %c2_i32 : i32
    %58 = arith.extui %57 : i1 to i32
    %c0_i32_29 = arith.constant 0 : i32
    %59 = arith.cmpi ne, %58, %c0_i32_29 : i32
    scf.if %59 {
      %c0_30 = arith.constant 0 : index
      %c0_31 = arith.constant 0 : index
      %60 = vector.load %arg12[%c0_30, %c0_31] : memref<8x1xf32, #tpu.memory_space<vmem>>, vector<8x1xf32>
      %c0_32 = arith.constant 0 : index
      %c0_33 = arith.constant 0 : index
      %61 = vector.load %arg13[%c0_32, %c0_33] : memref<8x1xf32, #tpu.memory_space<vmem>>, vector<8x1xf32>
      %62 = math.log %61 : vector<8x1xf32>
      %63 = arith.addf %60, %62 : vector<8x1xf32>
      %c0_34 = arith.constant 0 : index
      %c0_35 = arith.constant 0 : index
      %64 = vector.load %arg14[%c0_34, %c0_35] : memref<8x1xf32, #tpu.memory_space<vmem>>, vector<8x1xf32>
      %65 = arith.subf %63, %64 : vector<8x1xf32>
      %66 = tpu.iota {dimensions = array<i32: 0>} : vector<8x1xi32>
      %c8_i32_36 = arith.constant 8 : i32
      %67 = vector.broadcast %c8_i32_36 : i32 to vector<8x1xi32>
      %68 = arith.cmpi slt, %66, %67 : vector<8x1xi32>
      %cst_37 = arith.constant 0.000000e+00 : f32
      %69 = vector.broadcast %cst_37 : f32 to vector<8x1xf32>
      %70 = arith.select %68, %65, %69 : vector<8x1xi1>, vector<8x1xf32>
      %71 = vector.shape_cast %70 : vector<8x1xf32> to vector<1x8x1xf32>
      %cst_38 = arith.constant dense<0.000000e+00> : vector<1xf32>
      %72 = vector.multi_reduction <add>, %71, %cst_38 [1, 2] : vector<1x8x1xf32> to vector<1xf32>
      %73 = vector.shape_cast %72 : vector<1xf32> to vector<1x1x1xf32>
      %74 = vector.extract %73[0, 0, 0] : f32 from vector<1x1x1xf32>
      %cst_39 = arith.constant 1.250000e-01 : f32
      %75 = arith.mulf %74, %cst_39 : f32
      %c0_40 = arith.constant 0 : index
      %c0_41 = arith.constant 0 : index
      %76 = memref.load %arg9[%c0_40, %c0_41] : memref<1x1xf32, #tpu.memory_space<smem>>
      memref.store %75, %arg9[%c0_40, %c0_41] : memref<1x1xf32, #tpu.memory_space<smem>>
    } else {
    }
    return
  }
  func.func @transform_0(%arg0: i32) -> (i32, i32) {
    %c0_i32 = arith.constant 0 : i32
    %c0_i32_0 = arith.constant 0 : i32
    %c0_i32_1 = arith.constant 0 : i32
    return %c0_i32, %c0_i32_0 : i32, i32
  }
  func.func @transform_1(%arg0: i32) -> (i32, i32) {
    %c0_i32 = arith.constant 0 : i32
    %c0_i32_0 = arith.constant 0 : i32
    %c0_i32_1 = arith.constant 0 : i32
    return %c0_i32, %c0_i32_0 : i32, i32
  }
  func.func @transform_2(%arg0: i32) -> (i32, i32) {
    %c0_i32 = arith.constant 0 : i32
    %c0_i32_0 = arith.constant 0 : i32
    return %c0_i32, %arg0 : i32, i32
  }
  func.func @transform_3(%arg0: i32) -> (i32, i32) {
    %c0_i32 = arith.constant 0 : i32
    %c0_i32_0 = arith.constant 0 : i32
    %c0_i32_1 = arith.constant 0 : i32
    return %c0_i32, %c0_i32_0 : i32, i32
  }
  func.func @transform_4(%arg0: i32) -> (i32, i32) {
    %c0_i32 = arith.constant 0 : i32
    %c0_i32_0 = arith.constant 0 : i32
    %c0_i32_1 = arith.constant 0 : i32
    return %c0_i32, %c0_i32_0 : i32, i32
  }
  func.func @transform_5(%arg0: i32) -> (i32, i32) {
    %c0_i32 = arith.constant 0 : i32
    %c0_i32_0 = arith.constant 0 : i32
    %c0_i32_1 = arith.constant 0 : i32
    return %c0_i32, %c0_i32_0 : i32, i32
  }
  func.func @transform_6(%arg0: i32) -> (i32, i32) {
    %c0_i32 = arith.constant 0 : i32
    %c0_i32_0 = arith.constant 0 : i32
    %c0_i32_1 = arith.constant 0 : i32
    return %c0_i32, %c0_i32_0 : i32, i32
  }
  func.func @transform_7(%arg0: i32) -> (i32, i32) {
    %c0_i32 = arith.constant 0 : i32
    %c0_i32_0 = arith.constant 0 : i32
    return %c0_i32, %arg0 : i32, i32
  }
  func.func @transform_8(%arg0: i32) -> (i32, i32) {
    %c0_i32 = arith.constant 0 : i32
    %c0_i32_0 = arith.constant 0 : i32
    %c0_i32_1 = arith.constant 0 : i32
    return %c0_i32, %c0_i32_0 : i32, i32
  }
}

</mosaic_0001>

<llo_original>
// kernel: retrieval_forward.1
$region0: #{retrieval_forward.1}
  #allocation0 [shape = 'u32[]', space=smem, size = 0x4, offset = 0x4, fixed_abs, tag = 'smem constant byte address 0x4 - core index']
  #allocation1 [shape = 'u32[72,128]{1,0:T(1,128)}', space=vmem, size = 0x9000, scoped, tag = 'internal scratch']
  #allocation2 [shape = 'f32[128,128]{1,0:T(8,128)}', space=vmem, size = 0x10000, scoped, tag = 'scratch operand']
  #allocation3 [shape = 'f32[8,128]{1,0:T(8,128)}', space=vmem, size = 0x1000, scoped, tag = 'scratch operand']
  #allocation4 [shape = 'f32[8,1]{1,0:T(8,128)}', space=vmem, size = 0x1000, scoped, tag = 'scratch operand']
  #allocation5 [shape = 'f32[8,1]{1,0:T(8,128)}', space=vmem, size = 0x1000, scoped, tag = 'scratch operand']
  #allocation6 [shape = 'f32[8,1]{1,0:T(8,128)}', space=vmem, size = 0x1000, scoped, tag = 'scratch operand']
  #allocation7 [shape = 'f32[1,1]{1,0:T(1,128)S(6)}', space=smem, size = 0x200, scoped, tag = 'scoped memory for retrieval_forward.1']
  %s0 = inlined_call_operand.<no memory space> [shape: f32[1,1], index: 0, kind: input, shape index: {}]
  %s1 = inlined_call_operand.vmem [shape: s32[8,1], index: 1, kind: input, shape index: {}]
  %s2 = inlined_call_operand.vmem [shape: s32[2,384], index: 2, kind: input, shape index: {}]
  %s3 = inlined_call_operand.vmem [shape: f32[128,384], index: 3, kind: input, shape index: {}]
  %s4 = inlined_call_operand.vmem [shape: f32[384,128], index: 4, kind: input, shape index: {}]
  %s5 = inlined_call_operand.vmem [shape: f32[8,128], index: 5, kind: input, shape index: {}]
  %s6 = inlined_call_operand.vmem [shape: f32[128,128], index: 6, kind: input, shape index: {}]
  %s7 = inlined_call_operand.hbm [shape: f32[8,384], index: 7, kind: output, shape index: {0}]
  %s8 = inlined_call_operand.hbm [shape: f32[1,1], index: 8, kind: output, shape index: {1}]
  %9 = xla_tuple %s7, %s8
  %s10 = sld [smem:[#allocation0]]
  $region77: #{retrieval_forward.1} parent=0
    _
  %s12 = ssub.s32 1, %s10
  %s13 = scalar_select 0, %s12, %s10
  %14 = sst [smem:[#allocation7]] %s0
  $region1: #{retrieval_forward.1} parent=0
    #allocation8 [shape = 'u8[8192]{0}', space=vmem, size = 0x2000, scoped, tag = 'output window, operand 0']
    #allocation9 [shape = 's32[2]{0}', space=sflag, size = 0x8, scoped, tag = 'scoped memory for retrieval_forward.1']
    #allocation10 [shape = 's32[2]{0}', space=sflag, size = 0x8, scoped, tag = 'scoped memory for retrieval_forward.1']
    #allocation11 [shape = 'u8[512]{0}', space=smem, size = 0x200, scoped, tag = 'output window, operand 1, single buffered']
    %15 = vsyncpa [#allocation9], 0
    %s16 = scalar_lea.sflag [#allocation9], 1
    %17 = vsyncpa %s16, 0
    %18 = vsyncpa [#allocation10], 0
    loop: start=0, step=1, limit=5
    $region2: #{retrieval_forward.1} parent=1 // loop_pre_header
      _
    $region3: #{retrieval_forward.1} parent=1 // loop_header
      %s20 = sphi 0, %s24
      %p21 = scmp.ge.s32.totalorder %s20, 5
      %s28 = sphi 0, %s28
      %s30 = sphi 0, %s28
      %s31 = sphi 0, %s30
      %s45 = sphi 0, %s31
      %s49 = sphi 0, %s49
      %s51 = sphi 0, %s49
      %s52 = sphi 0, %s51
      %s66 = sphi 0, %s52
      %s72 = sphi 0, %s74
      %s75 = sphi 0, %s72
      %s76 = sphi 0, %s75
      %s92 = sphi 0, %s76
      %s96 = sphi 0, %s96
      %s98 = sphi 0, %s96
      %s99 = sphi 0, %s98
      %s113 = sphi 0, %s99
      %s117 = sphi 0, %s117
      %s119 = sphi 0, %s117
      %s120 = sphi 0, %s119
      %s134 = sphi 0, %s120
      %s138 = sphi 0, %s138
      %s140 = sphi 0, %s138
      %s141 = sphi 0, %s140
      %s155 = sphi 0, %s141
      %s159 = sphi 0, %s159
      %s161 = sphi 0, %s159
      %s162 = sphi 0, %s161
      %s176 = sphi 0, %s162
      %s182 = sphi 0, %s184
      %s185 = sphi 0, %s182
      %s186 = sphi 0, %s185
      %s202 = sphi 0, %s186
      %s206 = sphi 0, %s206
      %s208 = sphi 0, %s206
      %s209 = sphi 0, %s208
      %s223 = sphi 0, %s209
    $region4: #{retrieval_forward.1} parent=1 // loop_header_branch
      %23 = sbr.rel (%p21) target = $region8
    $region5: #{retrieval_forward.1} parent=1 // loop_body
      %s25 = ssub.s32 %s20, 1
      %s26 = ssub.s32 %s20, 2
      %s27 = sadd.s32 %s20, 1
      %s29 = sadd.s32 %s28, 1
      %p32 = scmp.eq.s32.totalorder %s20, 2
      %p33 = scmp.ne.s32.totalorder %s28, %s30
      %p34 = scmp.eq.s32.totalorder %s20, 0
      %p35 = por %p33, %p34
      %p36 = scmp.ne.s32.totalorder %s28, %s30
      %p37 = scmp.eq.s32.totalorder %s25, 2
      %p38 = por %p36, %p37
      %p39 = scmp.ne.s32.totalorder %s30, %s31
      %p40 = scmp.eq.s32.totalorder %s25, 0
      %p41 = por %p39, %p40
      %p42 = scmp.ne.s32.totalorder %s30, %s31
      %p43 = scmp.eq.s32.totalorder %s26, 2
      %p44 = por %p42, %p43
      %p46 = scmp.ne.s32.totalorder %s31, %s45
      %p47 = scmp.eq.s32.totalorder %s26, 0
      %p48 = por %p46, %p47
      %s50 = sadd.s32 %s49, 1
      %p53 = scmp.eq.s32.totalorder %s20, 2
      %p54 = scmp.ne.s32.totalorder %s49, %s51
      %p55 = scmp.eq.s32.totalorder %s20, 0
      %p56 = por %p54, %p55
      %p57 = scmp.ne.s32.totalorder %s49, %s51
      %p58 = scmp.eq.s32.totalorder %s25, 2
      %p59 = por %p57, %p58
      %p60 = scmp.ne.s32.totalorder %s51, %s52
      %p61 = scmp.eq.s32.totalorder %s25, 0
      %p62 = por %p60, %p61
      %p63 = scmp.ne.s32.totalorder %s51, %s52
      %p64 = scmp.eq.s32.totalorder %s26, 2
      %p65 = por %p63, %p64
      %p67 = scmp.ne.s32.totalorder %s52, %s66
      %p68 = scmp.eq.s32.totalorder %s26, 0
      %p69 = por %p67, %p68
      %s70 = ssub.s32 %s20, %s27
      %p71 = scmp.eq.s32.totalorder %s70, 0
      %s73 = sadd.s32 %s72, 1
      %s74 = scalar_select %p71, %s72, %s73
      %p77 = pneg %p71
      %p78 = scmp.eq.s32.totalorder %s20, 2
      %p79 = por %p77, %p78
      %p80 = scmp.ne.s32.totalorder %s72, %s75
      %p81 = scmp.eq.s32.totalorder %s20, 0
      %p82 = por %p80, %p81
      %p83 = scmp.ne.s32.totalorder %s72, %s75
      %p84 = scmp.eq.s32.totalorder %s25, 2
      %p85 = por %p83, %p84
      %p86 = scmp.ne.s32.totalorder %s75, %s76
      %p87 = scmp.eq.s32.totalorder %s25, 0
      %p88 = por %p86, %p87
      %p89 = scmp.ne.s32.totalorder %s75, %s76
      %p90 = scmp.eq.s32.totalorder %s26, 2
      %p91 = por %p89, %p90
      %p93 = scmp.ne.s32.totalorder %s76, %s92
      %p94 = scmp.eq.s32.totalorder %s26, 0
      %p95 = por %p93, %p94
      %s97 = sadd.s32 %s96, 1
      %p100 = scmp.eq.s32.totalorder %s20, 2
      %p101 = scmp.ne.s32.totalorder %s96, %s98
      %p102 = scmp.eq.s32.totalorder %s20, 0
      %p103 = por %p101, %p102
      %p104 = scmp.ne.s32.totalorder %s96, %s98
      %p105 = scmp.eq.s32.totalorder %s25, 2
      %p106 = por %p104, %p105
      %p107 = scmp.ne.s32.totalorder %s98, %s99
      %p108 = scmp.eq.s32.totalorder %s25, 0
      %p109 = por %p107, %p108
      %p110 = scmp.ne.s32.totalorder %s98, %s99
      %p111 = scmp.eq.s32.totalorder %s26, 2
      %p112 = por %p110, %p111
      %p114 = scmp.ne.s32.totalorder %s99, %s113
      %p115 = scmp.eq.s32.totalorder %s26, 0
      %p116 = por %p114, %p115
      %s118 = sadd.s32 %s117, 1
      %p121 = scmp.eq.s32.totalorder %s20, 2
      %p122 = scmp.ne.s32.totalorder %s117, %s119
      %p123 = scmp.eq.s32.totalorder %s20, 0
      %p124 = por %p122, %p123
      %p125 = scmp.ne.s32.totalorder %s117, %s119
      %p126 = scmp.eq.s32.totalorder %s25, 2
      %p127 = por %p125, %p126
      %p128 = scmp.ne.s32.totalorder %s119, %s120
      %p129 = scmp.eq.s32.totalorder %s25, 0
      %p130 = por %p128, %p129
      %p131 = scmp.ne.s32.totalorder %s119, %s120
      %p132 = scmp.eq.s32.totalorder %s26, 2
      %p133 = por %p131, %p132
      %p135 = scmp.ne.s32.totalorder %s120, %s134
      %p136 = scmp.eq.s32.totalorder %s26, 0
      %p137 = por %p135, %p136
      %s139 = sadd.s32 %s138, 1
      %p142 = scmp.eq.s32.totalorder %s20, 2
      %p143 = scmp.ne.s32.totalorder %s138, %s140
      %p144 = scmp.eq.s32.totalorder %s20, 0
      %p145 = por %p143, %p144
      %p146 = scmp.ne.s32.totalorder %s138, %s140
      %p147 = scmp.eq.s32.totalorder %s25, 2
      %p148 = por %p146, %p147
      %p149 = scmp.ne.s32.totalorder %s140, %s141
      %p150 = scmp.eq.s32.totalorder %s25, 0
      %p151 = por %p149, %p150
      %p152 = scmp.ne.s32.totalorder %s140, %s141
      %p153 = scmp.eq.s32.totalorder %s26, 2
      %p154 = por %p152, %p153
      %p156 = scmp.ne.s32.totalorder %s141, %s155
      %p157 = scmp.eq.s32.totalorder %s26, 0
      %p158 = por %p156, %p157
      %s160 = sadd.s32 %s159, 1
      %p163 = scmp.eq.s32.totalorder %s20, 2
      %p164 = scmp.ne.s32.totalorder %s159, %s161
      %p165 = scmp.eq.s32.totalorder %s20, 0
      %p166 = por %p164, %p165
      %p167 = scmp.ne.s32.totalorder %s159, %s161
      %p168 = scmp.eq.s32.totalorder %s25, 2
      %p169 = por %p167, %p168
      %p170 = scmp.ne.s32.totalorder %s161, %s162
      %p171 = scmp.eq.s32.totalorder %s25, 0
      %p172 = por %p170, %p171
      %p173 = scmp.ne.s32.totalorder %s161, %s162
      %p174 = scmp.eq.s32.totalorder %s26, 2
      %p175 = por %p173, %p174
      %p177 = scmp.ne.s32.totalorder %s162, %s176
      %p178 = scmp.eq.s32.totalorder %s26, 0
      %p179 = por %p177, %p178
      %s180 = ssub.s32 %s20, %s27
      %p181 = scmp.eq.s32.totalorder %s180, 0
      %s183 = sadd.s32 %s182, 1
      %s184 = scalar_select %p181, %s182, %s183
      %p187 = pneg %p181
      %p188 = scmp.eq.s32.totalorder %s20, 2
      %p189 = por %p187, %p188
      %p190 = scmp.ne.s32.totalorder %s182, %s185
      %p191 = scmp.eq.s32.totalorder %s20, 0
      %p192 = por %p190, %p191
      %p193 = scmp.ne.s32.totalorder %s182, %s185
      %p194 = scmp.eq.s32.totalorder %s25, 2
      %p195 = por %p193, %p194
      %p196 = scmp.ne.s32.totalorder %s185, %s186
      %p197 = scmp.eq.s32.totalorder %s25, 0
      %p198 = por %p196, %p197
      %p199 = scmp.ne.s32.totalorder %s185, %s186
      %p200 = scmp.eq.s32.totalorder %s26, 2
      %p201 = por %p199, %p200
      %p203 = scmp.ne.s32.totalorder %s186, %s202
      %p204 = scmp.eq.s32.totalorder %s26, 0
      %p205 = por %p203, %p204
      %s207 = sadd.s32 %s206, 1
      %p210 = scmp.eq.s32.totalorder %s20, 2
      %p211 = scmp.ne.s32.totalorder %s206, %s208
      %p212 = scmp.eq.s32.totalorder %s20, 0
      %p213 = por %p211, %p212
      %p214 = scmp.ne.s32.totalorder %s206, %s208
      %p215 = scmp.eq.s32.totalorder %s25, 2
      %p216 = por %p214, %p215
      %p217 = scmp.ne.s32.totalorder %s208, %s209
      %p218 = scmp.eq.s32.totalorder %s25, 0
      %p219 = por %p217, %p218
      %p220 = scmp.ne.s32.totalorder %s208, %s209
      %p221 = scmp.eq.s32.totalorder %s26, 2
      %p222 = por %p220, %p221
      %p224 = scmp.ne.s32.totalorder %s209, %s223
      %p225 = scmp.eq.s32.totalorder %s26, 0
      %p226 = por %p224, %p225
      %p227 = scmp.le.s32.totalorder 1, %s20
      %p228 = scmp.lt.s32.totalorder %s20, 4
      %p229 = pnand %p227, %p228
      %p230 = pneg %p229
      // Predicated region
      $region9: #{retrieval_forward.1} parent=5 // pred_check
        _
      $region10: #{retrieval_forward.1} parent=5 // pred_check_branch
        %232 = sbr.rel (%p229) target = $region12
      $region11: #{retrieval_forward.1} parent=5 // pred_region
        %s233 = ssub.s32 %s20, 1
        // Predicated region
        $region13: #{retrieval_forward.1} parent=11 // pred_check
          %p234 = pneg %p41
        $region14: #{retrieval_forward.1} parent=11 // pred_check_branch
          %236 = sbr.rel (%p234) target = $region16
        $region15: #{retrieval_forward.1} parent=11 // pred_region
          _
        $region16: #{retrieval_forward.1} parent=11 // pred_fallthru
          _
        // Predicated region
        $region17: #{retrieval_forward.1} parent=11 // pred_check
          %p237 = pneg %p62
        $region18: #{retrieval_forward.1} parent=11 // pred_check_branch
          %239 = sbr.rel (%p237) target = $region20
        $region19: #{retrieval_forward.1} parent=11 // pred_region
          _
        $region20: #{retrieval_forward.1} parent=11 // pred_fallthru
          _
        // Predicated region
        $region21: #{retrieval_forward.1} parent=11 // pred_check
          %p240 = pneg %p109
        $region22: #{retrieval_forward.1} parent=11 // pred_check_branch
          %242 = sbr.rel (%p240) target = $region24
        $region23: #{retrieval_forward.1} parent=11 // pred_region
          _
        $region24: #{retrieval_forward.1} parent=11 // pred_fallthru
          _
        // Predicated region
        $region25: #{retrieval_forward.1} parent=11 // pred_check
          %p243 = pneg %p130
        $region26: #{retrieval_forward.1} parent=11 // pred_check_branch
          %245 = sbr.rel (%p243) target = $region28
        $region27: #{retrieval_forward.1} parent=11 // pred_region
          _
        $region28: #{retrieval_forward.1} parent=11 // pred_fallthru
          _
        // Predicated region
        $region29: #{retrieval_forward.1} parent=11 // pred_check
          %p246 = pneg %p151
        $region30: #{retrieval_forward.1} parent=11 // pred_check_branch
          %248 = sbr.rel (%p246) target = $region32
        $region31: #{retrieval_forward.1} parent=11 // pred_region
          _
        $region32: #{retrieval_forward.1} parent=11 // pred_fallthru
          _
        // Predicated region
        $region33: #{retrieval_forward.1} parent=11 // pred_check
          %p249 = pneg %p172
        $region34: #{retrieval_forward.1} parent=11 // pred_check_branch
          %251 = sbr.rel (%p249) target = $region36
        $region35: #{retrieval_forward.1} parent=11 // pred_region
          _
        $region36: #{retrieval_forward.1} parent=11 // pred_fallthru
          _
      $region12: #{retrieval_forward.1} parent=5 // pred_fallthru
        _
      %p252 = scmp.lt.s32.totalorder %s20, 3
      // Predicated region
      $region37: #{retrieval_forward.1} parent=5 // pred_check
        %p253 = pneg %p252
      $region38: #{retrieval_forward.1} parent=5 // pred_check_branch
        %255 = sbr.rel (%p253) target = $region40
      $region39: #{retrieval_forward.1} parent=5 // pred_region
        // Predicated region
        $region41: #{retrieval_forward.1} parent=39 // pred_check
          %p256 = pneg %p82
        $region42: #{retrieval_forward.1} parent=39 // pred_check_branch
          %258 = sbr.rel (%p256) target = $region44
        $region43: #{retrieval_forward.1} parent=39 // pred_region
          %p259 = scmp.lt.s32.totalorder %s20, 2
          %s260 = scalar_select %p259, %s20, 2
          %s261 = smul.addr %s260, 2
          %s262 = scalar_lea.vmem %s2, %s261
        $region44: #{retrieval_forward.1} parent=39 // pred_fallthru
          _
      $region40: #{retrieval_forward.1} parent=5 // pred_fallthru
        _
      %p263 = scmp.le.s32.totalorder 1, %s20
      %p264 = scmp.lt.s32.totalorder %s20, 4
      %p265 = pnand %p263, %p264
      %p266 = pneg %p265
      // Predicated region
      $region45: #{retrieval_forward.1} parent=5 // pred_check
        _
      $region46: #{retrieval_forward.1} parent=5 // pred_check_branch
        %268 = sbr.rel (%p265) target = $region48
      $region47: #{retrieval_forward.1} parent=5 // pred_region
        %s269 = ssub.s32 %s20, 1
        %p270 = pneg %p41
        %p271 = pneg %p38
        %p272 = pneg %p62
        %p273 = pneg %p59
        %p274 = scmp.lt.s32.totalorder %s25, 2
        %s275 = scalar_select %p274, %s25, 2
        %s276 = smul.addr %s275, 2
        %s277 = scalar_lea.vmem %s2, %s276
        %p278 = pneg %p88
        %p279 = pneg %p85
        %p280 = pneg %p109
        %p281 = pneg %p106
        %p282 = pneg %p130
        %p283 = pneg %p127
        %p284 = pneg %p151
        %p285 = pneg %p148
        %p286 = pneg %p172
        %p287 = pneg %p169
        %p288 = pneg %p198
        %p289 = pneg %p195
        %s290 = sand.u32 %s185, 1
        %s291 = scalar_lea.sflag [#allocation9], %s290
        %s292 = sand.u32 %s185, 1
        %s293 = smul.addr %s292, 8
        %s294 = scalar_lea.vmem [#allocation8], %s293
        %p295 = pneg %p219
        %p296 = pneg %p216
        %p297 = scmp.lt.s32.totalorder %s25, 2
        %s298 = scalar_select %p297, %s25, 2
        %s299 = smul.addr %s298, 2
        %s300 = scalar_lea.vmem %s2, %s299
        %p301 = scmp.eq.s32.totalorder %s25, 0
        // Predicated region
        $region49: #{retrieval_forward.1} parent=47 // pred_check
          %p302 = pneg %p301
        $region50: #{retrieval_forward.1} parent=47 // pred_check_branch
          %304 = sbr.rel (%p302) target = $region52
        $region51: #{retrieval_forward.1} parent=47 // pred_region
          %v305 = vld [vmem:[%s3] sm:$0xff]
          %v306 = vld [vmem:[%s3 + $0x8] sm:$0xff]
          %v307 = vld [vmem:[%s3 + $0x10] sm:$0xff]
          %v308 = vld [vmem:[%s3 + $0x18] sm:$0xff]
          %v309 = vld [vmem:[%s3 + $0x20] sm:$0xff]
          %v310 = vld [vmem:[%s3 + $0x28] sm:$0xff]
          %v311 = vld [vmem:[%s3 + $0x30] sm:$0xff]
          %v312 = vld [vmem:[%s3 + $0x38] sm:$0xff]
          %v313 = vld [vmem:[%s3 + $0x40] sm:$0xff]
          %v314 = vld [vmem:[%s3 + $0x48] sm:$0xff]
          %v315 = vld [vmem:[%s3 + $0x50] sm:$0xff]
          %v316 = vld [vmem:[%s3 + $0x58] sm:$0xff]
          %v317 = vld [vmem:[%s3 + $0x60] sm:$0xff]
          %v318 = vld [vmem:[%s3 + $0x68] sm:$0xff]
          %v319 = vld [vmem:[%s3 + $0x70] sm:$0xff]
          %v320 = vld [vmem:[%s3 + $0x78] sm:$0xff]
          %v321 = vld [vmem:[%s3 + $0x80] sm:$0xff]
          %v322 = vld [vmem:[%s3 + $0x88] sm:$0xff]
          %v323 = vld [vmem:[%s3 + $0x90] sm:$0xff]
          %v324 = vld [vmem:[%s3 + $0x98] sm:$0xff]
          %v325 = vld [vmem:[%s3 + $0xa0] sm:$0xff]
          %v326 = vld [vmem:[%s3 + $0xa8] sm:$0xff]
          %v327 = vld [vmem:[%s3 + $0xb0] sm:$0xff]
          %v328 = vld [vmem:[%s3 + $0xb8] sm:$0xff]
          %v329 = vld [vmem:[%s3 + $0xc0] sm:$0xff]
          %v330 = vld [vmem:[%s3 + $0xc8] sm:$0xff]
          %v331 = vld [vmem:[%s3 + $0xd0] sm:$0xff]
          %v332 = vld [vmem:[%s3 + $0xd8] sm:$0xff]
          %v333 = vld [vmem:[%s3 + $0xe0] sm:$0xff]
          %v334 = vld [vmem:[%s3 + $0xe8] sm:$0xff]
          %v335 = vld [vmem:[%s3 + $0xf0] sm:$0xff]
          %v336 = vld [vmem:[%s3 + $0xf8] sm:$0xff]
          %v337 = vld [vmem:[%s3 + $0x100] sm:$0xff]
          %v338 = vld [vmem:[%s3 + $0x108] sm:$0xff]
          %v339 = vld [vmem:[%s3 + $0x110] sm:$0xff]
          %v340 = vld [vmem:[%s3 + $0x118] sm:$0xff]
          %v341 = vld [vmem:[%s3 + $0x120] sm:$0xff]
          %v342 = vld [vmem:[%s3 + $0x128] sm:$0xff]
          %v343 = vld [vmem:[%s3 + $0x130] sm:$0xff]
          %v344 = vld [vmem:[%s3 + $0x138] sm:$0xff]
          %v345 = vld [vmem:[%s3 + $0x140] sm:$0xff]
          %v346 = vld [vmem:[%s3 + $0x148] sm:$0xff]
          %v347 = vld [vmem:[%s3 + $0x150] sm:$0xff]
          %v348 = vld [vmem:[%s3 + $0x158] sm:$0xff]
          %v349 = vld [vmem:[%s3 + $0x160] sm:$0xff]
          %v350 = vld [vmem:[%s3 + $0x168] sm:$0xff]
          %v351 = vld [vmem:[%s3 + $0x170] sm:$0xff]
          %v352 = vld [vmem:[%s3 + $0x178] sm:$0xff]
          %v353 = vld [vmem:[%s4] sm:$0xff]
          %v354 = vld [vmem:[%s4 + $0x8] sm:$0xff]
          %v355 = vld [vmem:[%s4 + $0x10] sm:$0xff]
          %v356 = vld [vmem:[%s4 + $0x18] sm:$0xff]
          %v357 = vld [vmem:[%s4 + $0x20] sm:$0xff]
          %v358 = vld [vmem:[%s4 + $0x28] sm:$0xff]
          %v359 = vld [vmem:[%s4 + $0x30] sm:$0xff]
          %v360 = vld [vmem:[%s4 + $0x38] sm:$0xff]
          %v361 = vld [vmem:[%s4 + $0x40] sm:$0xff]
          %v362 = vld [vmem:[%s4 + $0x48] sm:$0xff]
          %v363 = vld [vmem:[%s4 + $0x50] sm:$0xff]
          %v364 = vld [vmem:[%s4 + $0x58] sm:$0xff]
          %v365 = vld [vmem:[%s4 + $0x60] sm:$0xff]
          %v366 = vld [vmem:[%s4 + $0x68] sm:$0xff]
          %v367 = vld [vmem:[%s4 + $0x70] sm:$0xff]
          %v368 = vld [vmem:[%s4 + $0x78] sm:$0xff]
          %v369 = vld [vmem:[%s4 + $0x80] sm:$0xff]
          %v370 = vld [vmem:[%s4 + $0x88] sm:$0xff]
          %v371 = vld [vmem:[%s4 + $0x90] sm:$0xff]
          %v372 = vld [vmem:[%s4 + $0x98] sm:$0xff]
          %v373 = vld [vmem:[%s4 + $0xa0] sm:$0xff]
          %v374 = vld [vmem:[%s4 + $0xa8] sm:$0xff]
          %v375 = vld [vmem:[%s4 + $0xb0] sm:$0xff]
          %v376 = vld [vmem:[%s4 + $0xb8] sm:$0xff]
          %v377 = vld [vmem:[%s4 + $0xc0] sm:$0xff]
          %v378 = vld [vmem:[%s4 + $0xc8] sm:$0xff]
          %v379 = vld [vmem:[%s4 + $0xd0] sm:$0xff]
          %v380 = vld [vmem:[%s4 + $0xd8] sm:$0xff]
          %v381 = vld [vmem:[%s4 + $0xe0] sm:$0xff]
          %v382 = vld [vmem:[%s4 + $0xe8] sm:$0xff]
          %v383 = vld [vmem:[%s4 + $0xf0] sm:$0xff]
          %v384 = vld [vmem:[%s4 + $0xf8] sm:$0xff]
          %v385 = vld [vmem:[%s4 + $0x100] sm:$0xff]
          %v386 = vld [vmem:[%s4 + $0x108] sm:$0xff]
          %v387 = vld [vmem:[%s4 + $0x110] sm:$0xff]
          %v388 = vld [vmem:[%s4 + $0x118] sm:$0xff]
          %v389 = vld [vmem:[%s4 + $0x120] sm:$0xff]
          %v390 = vld [vmem:[%s4 + $0x128] sm:$0xff]
          %v391 = vld [vmem:[%s4 + $0x130] sm:$0xff]
          %v392 = vld [vmem:[%s4 + $0x138] sm:$0xff]
          %v393 = vld [vmem:[%s4 + $0x140] sm:$0xff]
          %v394 = vld [vmem:[%s4 + $0x148] sm:$0xff]
          %v395 = vld [vmem:[%s4 + $0x150] sm:$0xff]
          %v396 = vld [vmem:[%s4 + $0x158] sm:$0xff]
          %v397 = vld [vmem:[%s4 + $0x160] sm:$0xff]
          %v398 = vld [vmem:[%s4 + $0x168] sm:$0xff]
          %v399 = vld [vmem:[%s4 + $0x170] sm:$0xff]
          %v400 = vld [vmem:[%s4 + $0x178] sm:$0xff]
          %401 = vmatpush.msra.mxu0 %v368
          %402 = vmatpush.msra.mxu0 %v367
          %403 = vmatpush.msra.mxu0 %v366
          %404 = vmatpush.msra.mxu0 %v365
          %405 = vmatpush.msra.mxu0 %v364
          %406 = vmatpush.msra.mxu0 %v363
          %407 = vmatpush.msra.mxu0 %v362
          %408 = vmatpush.msra.mxu0 %v361
          %409 = vmatpush.msra.mxu0 %v360
          %410 = vmatpush.msra.mxu0 %v359
          %411 = vmatpush.msra.mxu0 %v358
          %412 = vmatpush.msra.mxu0 %v357
          %413 = vmatpush.msra.mxu0 %v356
          %414 = vmatpush.msra.mxu0 %v355
          %415 = vmatpush.msra.mxu0 %v354
          %416 = vmatpush.msra.mxu0 %v353
          %417 = vmatmul.f32.gmra.mxu0 %v305
          %v418 = vpop.f32.mrf.mxu0
          %v419 = vadd.f32 0.0, %v418
          %420 = vmatmul.f32.gmra.mxu0 %v308
          %v421 = vpop.f32.mrf.mxu0
          %v422 = vadd.f32 0.0, %v421
          %423 = vmatmul.f32.gmra.mxu0 %v311
          %v424 = vpop.f32.mrf.mxu0
          %v425 = vadd.f32 0.0, %v424
          %426 = vmatmul.f32.gmra.mxu0 %v314
          %v427 = vpop.f32.mrf.mxu0
          %v428 = vadd.f32 0.0, %v427
          %429 = vmatmul.f32.gmra.mxu0 %v317
          %v430 = vpop.f32.mrf.mxu0
          %v431 = vadd.f32 0.0, %v430
          %432 = vmatmul.f32.gmra.mxu0 %v320
          %v433 = vpop.f32.mrf.mxu0
          %v434 = vadd.f32 0.0, %v433
          %435 = vmatmul.f32.gmra.mxu0 %v323
          %v436 = vpop.f32.mrf.mxu0
          %v437 = vadd.f32 0.0, %v436
          %438 = vmatmul.f32.gmra.mxu0 %v326
          %v439 = vpop.f32.mrf.mxu0
          %v440 = vadd.f32 0.0, %v439
          %441 = vmatmul.f32.gmra.mxu0 %v329
          %v442 = vpop.f32.mrf.mxu0
          %v443 = vadd.f32 0.0, %v442
          %444 = vmatmul.f32.gmra.mxu0 %v332
          %v445 = vpop.f32.mrf.mxu0
          %v446 = vadd.f32 0.0, %v445
          %447 = vmatmul.f32.gmra.mxu0 %v335
          %v448 = vpop.f32.mrf.mxu0
          %v449 = vadd.f32 0.0, %v448
          %450 = vmatmul.f32.gmra.mxu0 %v338
          %v451 = vpop.f32.mrf.mxu0
          %v452 = vadd.f32 0.0, %v451
          %453 = vmatmul.f32.gmra.mxu0 %v341
          %v454 = vpop.f32.mrf.mxu0
          %v455 = vadd.f32 0.0, %v454
          %456 = vmatmul.f32.gmra.mxu0 %v344
          %v457 = vpop.f32.mrf.mxu0
          %v458 = vadd.f32 0.0, %v457
          %459 = vmatmul.f32.gmra.mxu0 %v347
          %v460 = vpop.f32.mrf.mxu0
          %v461 = vadd.f32 0.0, %v460
          %462 = vmatmul.f32.gmra.mxu0 %v350
          %v463 = vpop.f32.mrf.mxu0
          %v464 = vadd.f32 0.0, %v463
          %465 = vdwg.mxu0
          %466 = vmatpush.msra.mxu0 %v384
          %467 = vmatpush.msra.mxu0 %v383
          %468 = vmatpush.msra.mxu0 %v382
          %469 = vmatpush.msra.mxu0 %v381
          %470 = vmatpush.msra.mxu0 %v380
          %471 = vmatpush.msra.mxu0 %v379
          %472 = vmatpush.msra.mxu0 %v378
          %473 = vmatpush.msra.mxu0 %v377
          %474 = vmatpush.msra.mxu0 %v376
          %475 = vmatpush.msra.mxu0 %v375
          %476 = vmatpush.msra.mxu0 %v374
          %477 = vmatpush.msra.mxu0 %v373
          %478 = vmatpush.msra.mxu0 %v372
          %479 = vmatpush.msra.mxu0 %v371
          %480 = vmatpush.msra.mxu0 %v370
          %481 = vmatpush.msra.mxu0 %v369
          %482 = vmatmul.f32.gmra.mxu0 %v306
          %v483 = vpop.f32.mrf.mxu0
          %v484 = vadd.f32 %v419, %v483
          %485 = vmatmul.f32.gmra.mxu0 %v309
          %v486 = vpop.f32.mrf.mxu0
          %v487 = vadd.f32 %v422, %v486
          %488 = vmatmul.f32.gmra.mxu0 %v312
          %v489 = vpop.f32.mrf.mxu0
          %v490 = vadd.f32 %v425, %v489
          %491 = vmatmul.f32.gmra.mxu0 %v315
          %v492 = vpop.f32.mrf.mxu0
          %v493 = vadd.f32 %v428, %v492
          %494 = vmatmul.f32.gmra.mxu0 %v318
          %v495 = vpop.f32.mrf.mxu0
          %v496 = vadd.f32 %v431, %v495
          %497 = vmatmul.f32.gmra.mxu0 %v321
          %v498 = vpop.f32.mrf.mxu0
          %v499 = vadd.f32 %v434, %v498
          %500 = vmatmul.f32.gmra.mxu0 %v324
          %v501 = vpop.f32.mrf.mxu0
          %v502 = vadd.f32 %v437, %v501
          %503 = vmatmul.f32.gmra.mxu0 %v327
          %v504 = vpop.f32.mrf.mxu0
          %v505 = vadd.f32 %v440, %v504
          %506 = vmatmul.f32.gmra.mxu0 %v330
          %v507 = vpop.f32.mrf.mxu0
          %v508 = vadd.f32 %v443, %v507
          %509 = vmatmul.f32.gmra.mxu0 %v333
          %v510 = vpop.f32.mrf.mxu0
          %v511 = vadd.f32 %v446, %v510
          %512 = vmatmul.f32.gmra.mxu0 %v336
          %v513 = vpop.f32.mrf.mxu0
          %v514 = vadd.f32 %v449, %v513
          %515 = vmatmul.f32.gmra.mxu0 %v339
          %v516 = vpop.f32.mrf.mxu0
          %v517 = vadd.f32 %v452, %v516
          %518 = vmatmul.f32.gmra.mxu0 %v342
          %v519 = vpop.f32.mrf.mxu0
          %v520 = vadd.f32 %v455, %v519
          %521 = vmatmul.f32.gmra.mxu0 %v345
          %v522 = vpop.f32.mrf.mxu0
          %v523 = vadd.f32 %v458, %v522
          %524 = vmatmul.f32.gmra.mxu0 %v348
          %v525 = vpop.f32.mrf.mxu0
          %v526 = vadd.f32 %v461, %v525
          %527 = vmatmul.f32.gmra.mxu0 %v351
          %v528 = vpop.f32.mrf.mxu0
          %v529 = vadd.f32 %v464, %v528
          %530 = vdwg.mxu0
          %531 = vmatpush.msra.mxu0 %v400
          %532 = vmatpush.msra.mxu0 %v399
          %533 = vmatpush.msra.mxu0 %v398
          %534 = vmatpush.msra.mxu0 %v397
          %535 = vmatpush.msra.mxu0 %v396
          %536 = vmatpush.msra.mxu0 %v395
          %537 = vmatpush.msra.mxu0 %v394
          %538 = vmatpush.msra.mxu0 %v393
          %539 = vmatpush.msra.mxu0 %v392
          %540 = vmatpush.msra.mxu0 %v391
          %541 = vmatpush.msra.mxu0 %v390
          %542 = vmatpush.msra.mxu0 %v389
          %543 = vmatpush.msra.mxu0 %v388
          %544 = vmatpush.msra.mxu0 %v387
          %545 = vmatpush.msra.mxu0 %v386
          %546 = vmatpush.msra.mxu0 %v385
          %547 = vmatmul.f32.gmra.mxu0 %v307
          %v548 = vpop.f32.mrf.mxu0
          %v549 = vadd.f32 %v484, %v548
          %550 = vmatmul.f32.gmra.mxu0 %v310
          %v551 = vpop.f32.mrf.mxu0
          %v552 = vadd.f32 %v487, %v551
          %553 = vmatmul.f32.gmra.mxu0 %v313
          %v554 = vpop.f32.mrf.mxu0
          %v555 = vadd.f32 %v490, %v554
          %556 = vmatmul.f32.gmra.mxu0 %v316
          %v557 = vpop.f32.mrf.mxu0
          %v558 = vadd.f32 %v493, %v557
          %559 = vmatmul.f32.gmra.mxu0 %v319
          %v560 = vpop.f32.mrf.mxu0
          %v561 = vadd.f32 %v496, %v560
          %562 = vmatmul.f32.gmra.mxu0 %v322
          %v563 = vpop.f32.mrf.mxu0
          %v564 = vadd.f32 %v499, %v563
          %565 = vmatmul.f32.gmra.mxu0 %v325
          %v566 = vpop.f32.mrf.mxu0
          %v567 = vadd.f32 %v502, %v566
          %568 = vmatmul.f32.gmra.mxu0 %v328
          %v569 = vpop.f32.mrf.mxu0
          %v570 = vadd.f32 %v505, %v569
          %571 = vmatmul.f32.gmra.mxu0 %v331
          %v572 = vpop.f32.mrf.mxu0
          %v573 = vadd.f32 %v508, %v572
          %574 = vmatmul.f32.gmra.mxu0 %v334
          %v575 = vpop.f32.mrf.mxu0
          %v576 = vadd.f32 %v511, %v575
          %577 = vmatmul.f32.gmra.mxu0 %v337
          %v578 = vpop.f32.mrf.mxu0
          %v579 = vadd.f32 %v514, %v578
          %580 = vmatmul.f32.gmra.mxu0 %v340
          %v581 = vpop.f32.mrf.mxu0
          %v582 = vadd.f32 %v517, %v581
          %583 = vmatmul.f32.gmra.mxu0 %v343
          %v584 = vpop.f32.mrf.mxu0
          %v585 = vadd.f32 %v520, %v584
          %586 = vmatmul.f32.gmra.mxu0 %v346
          %v587 = vpop.f32.mrf.mxu0
          %v588 = vadd.f32 %v523, %v587
          %589 = vmatmul.f32.gmra.mxu0 %v349
          %v590 = vpop.f32.mrf.mxu0
          %v591 = vadd.f32 %v526, %v590
          %592 = vmatmul.f32.gmra.mxu0 %v352
          %v593 = vpop.f32.mrf.mxu0
          %v594 = vadd.f32 %v529, %v593
          %595 = vdwg.mxu0
          %596 = vst [vmem:[#allocation2] sm:$0xff] %v549
          %597 = vst [vmem:[#allocation2 + $0x8] sm:$0xff] %v552
          %598 = vst [vmem:[#allocation2 + $0x10] sm:$0xff] %v555
          %599 = vst [vmem:[#allocation2 + $0x18] sm:$0xff] %v558
          %600 = vst [vmem:[#allocation2 + $0x20] sm:$0xff] %v561
          %601 = vst [vmem:[#allocation2 + $0x28] sm:$0xff] %v564
          %602 = vst [vmem:[#allocation2 + $0x30] sm:$0xff] %v567
          %603 = vst [vmem:[#allocation2 + $0x38] sm:$0xff] %v570
          %604 = vst [vmem:[#allocation2 + $0x40] sm:$0xff] %v573
          %605 = vst [vmem:[#allocation2 + $0x48] sm:$0xff] %v576
          %606 = vst [vmem:[#allocation2 + $0x50] sm:$0xff] %v579
          %607 = vst [vmem:[#allocation2 + $0x58] sm:$0xff] %v582
          %608 = vst [vmem:[#allocation2 + $0x60] sm:$0xff] %v585
          %609 = vst [vmem:[#allocation2 + $0x68] sm:$0xff] %v588
          %610 = vst [vmem:[#allocation2 + $0x70] sm:$0xff] %v591
          %611 = vst [vmem:[#allocation2 + $0x78] sm:$0xff] %v594
          %s612 = sld [smem:[#allocation7]]
          %v613 = vld [vmem:[%s5] sm:$0xff]
          %v614 = vld [vmem:[%s6] sm:$0xff]
          %v615 = vld [vmem:[%s6 + $0x8] sm:$0xff]
          %v616 = vld [vmem:[%s6 + $0x10] sm:$0xff]
          %v617 = vld [vmem:[%s6 + $0x18] sm:$0xff]
          %v618 = vld [vmem:[%s6 + $0x20] sm:$0xff]
          %v619 = vld [vmem:[%s6 + $0x28] sm:$0xff]
          %v620 = vld [vmem:[%s6 + $0x30] sm:$0xff]
          %v621 = vld [vmem:[%s6 + $0x38] sm:$0xff]
          %v622 = vld [vmem:[%s6 + $0x40] sm:$0xff]
          %v623 = vld [vmem:[%s6 + $0x48] sm:$0xff]
          %v624 = vld [vmem:[%s6 + $0x50] sm:$0xff]
          %v625 = vld [vmem:[%s6 + $0x58] sm:$0xff]
          %v626 = vld [vmem:[%s6 + $0x60] sm:$0xff]
          %v627 = vld [vmem:[%s6 + $0x68] sm:$0xff]
          %v628 = vld [vmem:[%s6 + $0x70] sm:$0xff]
          %v629 = vld [vmem:[%s6 + $0x78] sm:$0xff]
          %630 = vmatpush.msra.mxu0 %v629
          %631 = vmatpush.msra.mxu0 %v628
          %632 = vmatpush.msra.mxu0 %v627
          %633 = vmatpush.msra.mxu0 %v626
          %634 = vmatpush.msra.mxu0 %v625
          %635 = vmatpush.msra.mxu0 %v624
          %636 = vmatpush.msra.mxu0 %v623
          %637 = vmatpush.msra.mxu0 %v622
          %638 = vmatpush.msra.mxu0 %v621
          %639 = vmatpush.msra.mxu0 %v620
          %640 = vmatpush.msra.mxu0 %v619
          %641 = vmatpush.msra.mxu0 %v618
          %642 = vmatpush.msra.mxu0 %v617
          %643 = vmatpush.msra.mxu0 %v616
          %644 = vmatpush.msra.mxu0 %v615
          %645 = vmatpush.msra.mxu0 %v614
          %646 = vmatmul.f32.gmra.mxu0 %v613
          %v647 = vpop.f32.mrf.mxu0
          %v648 = vadd.f32 0.0, %v647
          %649 = vdwg.mxu0
          %v650 = vstv %s612
          %v651 = vmul.f32 %v650, %v648
          %652 = vst [vmem:[#allocation3] sm:$0xff] %v651
          %vm653 = vcmask 7168
          %654 = vst.msk [vmem:[#allocation4] sm:$0xff] %vm653, -inf
          %655 = vst.msk [vmem:[#allocation5] sm:$0xff] %vm653, 0.0
          %656 = vst.msk [vmem:[#allocation6] sm:$0xff] %vm653, 0.0
        $region52: #{retrieval_forward.1} parent=47 // pred_fallthru
          _
        %v657 = vlaneseq
        %v658 = vshrl.u32 %v657, 7
        %v659 = vadd.s32 %v658, 8
        %v660 = vadd.s32 %v658, 16
        %v661 = vadd.s32 %v658, 24
        %v662 = vadd.s32 %v658, 32
        %v663 = vadd.s32 %v658, 40
        %v664 = vadd.s32 %v658, 48
        %v665 = vadd.s32 %v658, 56
        %v666 = vadd.s32 %v658, 64
        %v667 = vadd.s32 %v658, 72
        %v668 = vadd.s32 %v658, 80
        %v669 = vadd.s32 %v658, 88
        %v670 = vadd.s32 %v658, 96
        %v671 = vadd.s32 %v658, 104
        %v672 = vadd.s32 %v658, 112
        %v673 = vadd.s32 %v658, 120
        %v674 = vld [vmem:[%s300] sm:$0x1]
        %v675 = vld [vmem:[%s300 + $0x1] sm:$0x1]
        %v676 = vperm.slane %v674, 0
        %vm677 = vcmp.eq.s32.totalorder %v658, %v676
        %vm678 = vcmp.eq.s32.totalorder %v659, %v676
        %vm679 = vcmp.eq.s32.totalorder %v660, %v676
        %vm680 = vcmp.eq.s32.totalorder %v661, %v676
        %vm681 = vcmp.eq.s32.totalorder %v662, %v676
        %vm682 = vcmp.eq.s32.totalorder %v663, %v676
        %vm683 = vcmp.eq.s32.totalorder %v664, %v676
        %vm684 = vcmp.eq.s32.totalorder %v665, %v676
        %vm685 = vcmp.eq.s32.totalorder %v666, %v676
        %vm686 = vcmp.eq.s32.totalorder %v667, %v676
        %vm687 = vcmp.eq.s32.totalorder %v668, %v676
        %vm688 = vcmp.eq.s32.totalorder %v669, %v676
        %vm689 = vcmp.eq.s32.totalorder %v670, %v676
        %vm690 = vcmp.eq.s32.totalorder %v671, %v676
        %vm691 = vcmp.eq.s32.totalorder %v672, %v676
        %vm692 = vcmp.eq.s32.totalorder %v673, %v676
        %v693 = vadd.s32 %v675, 8
        %v694 = vperm.slane %v693, 0
        %vm695 = vcmp.eq.s32.totalorder %v658, %v694
        %vm696 = vcmp.eq.s32.totalorder %v659, %v694
        %vm697 = vcmp.eq.s32.totalorder %v660, %v694
        %vm698 = vcmp.eq.s32.totalorder %v661, %v694
        %vm699 = vcmp.eq.s32.totalorder %v662, %v694
        %vm700 = vcmp.eq.s32.totalorder %v663, %v694
        %vm701 = vcmp.eq.s32.totalorder %v664, %v694
        %vm702 = vcmp.eq.s32.totalorder %v665, %v694
        %vm703 = vcmp.eq.s32.totalorder %v666, %v694
        %vm704 = vcmp.eq.s32.totalorder %v667, %v694
        %vm705 = vcmp.eq.s32.totalorder %v668, %v694
        %vm706 = vcmp.eq.s32.totalorder %v669, %v694
        %vm707 = vcmp.eq.s32.totalorder %v670, %v694
        %vm708 = vcmp.eq.s32.totalorder %v671, %v694
        %vm709 = vcmp.eq.s32.totalorder %v672, %v694
        %vm710 = vcmp.eq.s32.totalorder %v673, %v694
        %vm711 = vmor %vm677, %vm695
        %vm712 = vmor %vm678, %vm696
        %vm713 = vmor %vm679, %vm697
        %vm714 = vmor %vm680, %vm698
        %vm715 = vmor %vm681, %vm699
        %vm716 = vmor %vm682, %vm700
        %vm717 = vmor %vm683, %vm701
        %vm718 = vmor %vm684, %vm702
        %vm719 = vmor %vm685, %vm703
        %vm720 = vmor %vm686, %vm704
        %vm721 = vmor %vm687, %vm705
        %vm722 = vmor %vm688, %vm706
        %vm723 = vmor %vm689, %vm707
        %vm724 = vmor %vm690, %vm708
        %vm725 = vmor %vm691, %vm709
        %vm726 = vmor %vm692, %vm710
        %vm727 = vcmp.eq.s32.totalorder %v658, 16
        %vm728 = vcmp.eq.s32.totalorder %v659, 16
        %vm729 = vcmp.eq.s32.totalorder %v660, 16
        %vm730 = vcmp.eq.s32.totalorder %v661, 16
        %vm731 = vcmp.eq.s32.totalorder %v662, 16
        %vm732 = vcmp.eq.s32.totalorder %v663, 16
        %vm733 = vcmp.eq.s32.totalorder %v664, 16
        %vm734 = vcmp.eq.s32.totalorder %v665, 16
        %vm735 = vcmp.eq.s32.totalorder %v666, 16
        %vm736 = vcmp.eq.s32.totalorder %v667, 16
        %vm737 = vcmp.eq.s32.totalorder %v668, 16
        %vm738 = vcmp.eq.s32.totalorder %v669, 16
        %vm739 = vcmp.eq.s32.totalorder %v670, 16
        %vm740 = vcmp.eq.s32.totalorder %v671, 16
        %vm741 = vcmp.eq.s32.totalorder %v672, 16
        %vm742 = vcmp.eq.s32.totalorder %v673, 16
        %vm743 = vmor %vm711, %vm727
        %vm744 = vmor %vm712, %vm728
        %vm745 = vmor %vm713, %vm729
        %vm746 = vmor %vm714, %vm730
        %vm747 = vmor %vm715, %vm731
        %vm748 = vmor %vm716, %vm732
        %vm749 = vmor %vm717, %vm733
        %vm750 = vmor %vm718, %vm734
        %vm751 = vmor %vm719, %vm735
        %vm752 = vmor %vm720, %vm736
        %vm753 = vmor %vm721, %vm737
        %vm754 = vmor %vm722, %vm738
        %vm755 = vmor %vm723, %vm739
        %vm756 = vmor %vm724, %vm740
        %vm757 = vmor %vm725, %vm741
        %vm758 = vmor %vm726, %vm742
        %v759 = vsel %vm743, 1, 0
        %v760 = vsel %vm744, 1, 0
        %v761 = vsel %vm745, 1, 0
        %v762 = vsel %vm746, 1, 0
        %v763 = vsel %vm747, 1, 0
        %v764 = vsel %vm748, 1, 0
        %v765 = vsel %vm749, 1, 0
        %v766 = vsel %vm750, 1, 0
        %v767 = vsel %vm751, 1, 0
        %v768 = vsel %vm752, 1, 0
        %v769 = vsel %vm753, 1, 0
        %v770 = vsel %vm754, 1, 0
        %v771 = vsel %vm755, 1, 0
        %v772 = vsel %vm756, 1, 0
        %v773 = vsel %vm757, 1, 0
        %v774 = vsel %vm758, 1, 0
        %v775 = vcvt.s32.f32 %v759
        %v776 = vcvt.s32.f32 %v760
        %v777 = vcvt.s32.f32 %v761
        %v778 = vcvt.s32.f32 %v762
        %v779 = vcvt.s32.f32 %v763
        %v780 = vcvt.s32.f32 %v764
        %v781 = vcvt.s32.f32 %v765
        %v782 = vcvt.s32.f32 %v766
        %v783 = vcvt.s32.f32 %v767
        %v784 = vcvt.s32.f32 %v768
        %v785 = vcvt.s32.f32 %v769
        %v786 = vcvt.s32.f32 %v770
        %v787 = vcvt.s32.f32 %v771
        %v788 = vcvt.s32.f32 %v772
        %v789 = vcvt.s32.f32 %v773
        %v790 = vcvt.s32.f32 %v774
        %v791 = vld [vmem:[#allocation2] sm:$0xff]
        %v792 = vld [vmem:[#allocation2 + $0x8] sm:$0xff]
        %v793 = vld [vmem:[#allocation2 + $0x10] sm:$0xff]
        %v794 = vld [vmem:[#allocation2 + $0x18] sm:$0xff]
        %v795 = vld [vmem:[#allocation2 + $0x20] sm:$0xff]
        %v796 = vld [vmem:[#allocation2 + $0x28] sm:$0xff]
        %v797 = vld [vmem:[#allocation2 + $0x30] sm:$0xff]
        %v798 = vld [vmem:[#allocation2 + $0x38] sm:$0xff]
        %v799 = vld [vmem:[#allocation2 + $0x40] sm:$0xff]
        %v800 = vld [vmem:[#allocation2 + $0x48] sm:$0xff]
        %v801 = vld [vmem:[#allocation2 + $0x50] sm:$0xff]
        %v802 = vld [vmem:[#allocation2 + $0x58] sm:$0xff]
        %v803 = vld [vmem:[#allocation2 + $0x60] sm:$0xff]
        %v804 = vld [vmem:[#allocation2 + $0x68] sm:$0xff]
        %v805 = vld [vmem:[#allocation2 + $0x70] sm:$0xff]
        %v806 = vld [vmem:[#allocation2 + $0x78] sm:$0xff]
        %807 = vmatpush.msra.mxu0 %v790
        %808 = vmatpush.msra.mxu0 %v789
        %809 = vmatpush.msra.mxu0 %v788
        %810 = vmatpush.msra.mxu0 %v787
        %811 = vmatpush.msra.mxu0 %v786
        %812 = vmatpush.msra.mxu0 %v785
        %813 = vmatpush.msra.mxu0 %v784
        %814 = vmatpush.msra.mxu0 %v783
        %815 = vmatpush.msra.mxu0 %v782
        %816 = vmatpush.msra.mxu0 %v781
        %817 = vmatpush.msra.mxu0 %v780
        %818 = vmatpush.msra.mxu0 %v779
        %819 = vmatpush.msra.mxu0 %v778
        %820 = vmatpush.msra.mxu0 %v777
        %821 = vmatpush.msra.mxu0 %v776
        %822 = vmatpush.msra.mxu0 %v775
        %823 = vmatmul.f32.gmra.mxu0 %v791
        %v824 = vpop.f32.mrf.mxu0
        %v825 = vadd.f32 0.0, %v824
        %826 = vmatmul.f32.gmra.mxu0 %v792
        %v827 = vpop.f32.mrf.mxu0
        %v828 = vadd.f32 0.0, %v827
        %829 = vmatmul.f32.gmra.mxu0 %v793
        %v830 = vpop.f32.mrf.mxu0
        %v831 = vadd.f32 0.0, %v830
        %832 = vmatmul.f32.gmra.mxu0 %v794
        %v833 = vpop.f32.mrf.mxu0
        %v834 = vadd.f32 0.0, %v833
        %835 = vmatmul.f32.gmra.mxu0 %v795
        %v836 = vpop.f32.mrf.mxu0
        %v837 = vadd.f32 0.0, %v836
        %838 = vmatmul.f32.gmra.mxu0 %v796
        %v839 = vpop.f32.mrf.mxu0
        %v840 = vadd.f32 0.0, %v839
        %841 = vmatmul.f32.gmra.mxu0 %v797
        %v842 = vpop.f32.mrf.mxu0
        %v843 = vadd.f32 0.0, %v842
        %844 = vmatmul.f32.gmra.mxu0 %v798
        %v845 = vpop.f32.mrf.mxu0
        %v846 = vadd.f32 0.0, %v845
        %847 = vmatmul.f32.gmra.mxu0 %v799
        %v848 = vpop.f32.mrf.mxu0
        %v849 = vadd.f32 0.0, %v848
        %850 = vmatmul.f32.gmra.mxu0 %v800
        %v851 = vpop.f32.mrf.mxu0
        %v852 = vadd.f32 0.0, %v851
        %853 = vmatmul.f32.gmra.mxu0 %v801
        %v854 = vpop.f32.mrf.mxu0
        %v855 = vadd.f32 0.0, %v854
        %856 = vmatmul.f32.gmra.mxu0 %v802
        %v857 = vpop.f32.mrf.mxu0
        %v858 = vadd.f32 0.0, %v857
        %859 = vmatmul.f32.gmra.mxu0 %v803
        %v860 = vpop.f32.mrf.mxu0
        %v861 = vadd.f32 0.0, %v860
        %862 = vmatmul.f32.gmra.mxu0 %v804
        %v863 = vpop.f32.mrf.mxu0
        %v864 = vadd.f32 0.0, %v863
        %865 = vmatmul.f32.gmra.mxu0 %v805
        %v866 = vpop.f32.mrf.mxu0
        %v867 = vadd.f32 0.0, %v866
        %868 = vmatmul.f32.gmra.mxu0 %v806
        %v869 = vpop.f32.mrf.mxu0
        %v870 = vadd.f32 0.0, %v869
        %871 = vdwg.mxu0
        %v872 = vld [vmem:[#allocation3] sm:$0xff]
        %873 = vmatpush.msra.mxu0 %v870
        %874 = vmatpush.msra.mxu0 %v867
        %875 = vmatpush.msra.mxu0 %v864
        %876 = vmatpush.msra.mxu0 %v861
        %877 = vmatpush.msra.mxu0 %v858
        %878 = vmatpush.msra.mxu0 %v855
        %879 = vmatpush.msra.mxu0 %v852
        %880 = vmatpush.msra.mxu0 %v849
        %881 = vmatpush.msra.mxu0 %v846
        %882 = vmatpush.msra.mxu0 %v843
        %883 = vmatpush.msra.mxu0 %v840
        %884 = vmatpush.msra.mxu0 %v837
        %885 = vmatpush.msra.mxu0 %v834
        %886 = vmatpush.msra.mxu0 %v831
        %887 = vmatpush.msra.mxu0 %v828
        %888 = vmatpush.msra.mxu0 %v825
        %889 = vmatmul.f32.gmra.mxu0 %v872
        %v890 = vpop.f32.mrf.mxu0
        %v891 = vadd.f32 0.0, %v890
        %892 = vdwg.mxu0
        %893 = vst [vmem:[%s294] sm:$0xff] %v891
        %s894 = smul.u32 %s25, 128
        %v895 = vlaneseq
        %v896 = vand.u32 %v895, 127
        %v897 = vstv %s894
        %v898 = vadd.s32 %v897, %v896
        %vm899 = vcmp.lt.s32.totalorder %v898, 300
        %v900 = vsel %vm899, %v891, -inf
        %v901 = vld [vmem:[#allocation4] sm:$0xff]
        %902 = vmax.xlane.f32.xlu0 %v900
        %v903 = vpop.xlane.xlu0 %902
        %v904 = vmax.f32 %v901, %v903
        %v905 = vsub.f32 %v901, %v904
        %v906 = vmul.f32 %v905, 1.442695
        %v907 = vpow.pop %v906
        %v908 = vld [vmem:[#allocation5] sm:$0xff]
        %v909 = vmul.f32 %v907, %v908
        %911 = vset.pattern.permute.xlu0 0
        %912 = vperm.xlu0 %911, %v904
        %v913 = vpop.permute.xlu0 %912
        %v915 = vsub.f32 %v900, %v913
        %v916 = vmul.f32 %v915, 1.442695
        %v917 = vpow.pop %v916
        %918 = vadd.xlane.f32.xlu0 %v917
        %v919 = vpop.xlane.xlu0 %918
        %v920 = vadd.f32 %v909, %v919
        %vm921 = vcmask 7168
        %922 = vst.msk [vmem:[#allocation5] sm:$0xff] %vm921, %v920
        %923 = vst.msk [vmem:[#allocation4] sm:$0xff] %vm921, %v904
        %v924 = vld [vmem:[%s1] sm:$0xff]
        %925 = vset.pattern.permute.xlu0 0
        %926 = vperm.xlu0 %925, %v924
        %v927 = vpop.permute.xlu0 %926
        %vm928 = vcmp.eq.s32.totalorder %v898, %v927
        %v929 = vld [vmem:[#allocation6] sm:$0xff]
        %v930 = vsel %vm928, %v891, 0.0
        %931 = vadd.xlane.f32.xlu0 %v930
        %v932 = vpop.xlane.xlu0 %931
        %v933 = vadd.f32 %v929, %v932
        %934 = vst.msk [vmem:[#allocation6] sm:$0xff] %vm921, %v933
        %p935 = scmp.eq.s32.totalorder %s25, 2
        // Predicated region
        $region53: #{retrieval_forward.1} parent=47 // pred_check
          %p936 = pneg %p935
        $region54: #{retrieval_forward.1} parent=47 // pred_check_branch
          %938 = sbr.rel (%p936) target = $region56
        $region55: #{retrieval_forward.1} parent=47 // pred_region
          %v939 = vld [vmem:[#allocation4] sm:$0xff]
          %v940 = vld [vmem:[#allocation5] sm:$0xff]
          %v941 = vlog2.pop %v940
          %v942 = vmul.f32 %v941, 0.6931472
          %v943 = vadd.f32 %v939, %v942
          %v944 = vld [vmem:[#allocation6] sm:$0xff]
          %v945 = vsub.f32 %v943, %v944
          %vm946 = vcmp.lt.s32.totalorder %v658, 8
          %v947 = vsel %vm946, %v945, 0.0
          %v948 = vsel %vm921, %v947, 0.0
          %949 = vadd.xlane.f32.xlu0 %v948
          %v950 = vpop.xlane.xlu0 %949
          %v951 = vrot.slane %v950, 4
          %v952 = vadd.f32 %v950, %v951
          %v953 = vrot.slane %v952, 2
          %v954 = vadd.f32 %v952, %v953
          %v955 = vrot.slane %v954, 1
          %v956 = vadd.f32 %v954, %v955
          %s957 = vtos %v956
          %s958 = smul.f32 %s957, 0.125
          %s959 = scalar_lea.smem [#allocation11], 0
          %960 = sst [smem:[%s959]] %s958
        $region56: #{retrieval_forward.1} parent=47 // pred_fallthru
          _
        %s961 = sand.u32 %s185, 1
        %s962 = scalar_lea.sflag [#allocation9], %s961
        %s963 = sand.u32 %s185, 1
        %s964 = smul.addr %s963, 8
        %s965 = scalar_lea.vmem [#allocation8], %s964
        // Predicated region
        $region57: #{retrieval_forward.1} parent=47 // pred_check
          %p966 = pneg %p195
        $region58: #{retrieval_forward.1} parent=47 // pred_check_branch
          %968 = sbr.rel (%p966) target = $region60
        $region59: #{retrieval_forward.1} parent=47 // pred_region
          %970 = vsyncadd %s962, 0
          %s971 = smul.addr %s25, 8
          %s972 = scalar_lea.hbm %s7, %s971
          %s974 = sshll.u32 %s965, 4
          %s975 = int_to_ptr.vmem [resolvable:$true] %s974
          %s976 = sshll.u32 %s972, 4
          %s977 = int_to_ptr.hbm [resolvable:$true] %s976
          %979 = dma.vmem_to_hbm [thread:$0]  %s975, 128, %s977, %s962
        $region60: #{retrieval_forward.1} parent=47 // pred_fallthru
          _
        // Predicated region
        $region61: #{retrieval_forward.1} parent=47 // pred_check
          %p980 = pneg %p216
        $region62: #{retrieval_forward.1} parent=47 // pred_check_branch
          %982 = sbr.rel (%p980) target = $region64
        $region63: #{retrieval_forward.1} parent=47 // pred_region
          %984 = vsyncadd [#allocation10], 0
          %s986 = sshll.u32 %s8, 4
          %s987 = int_to_ptr.hbm [resolvable:$true] %s986
          %989 = dma.smem_to_hbm [#allocation11], 16, %s987, [#allocation10]
        $region64: #{retrieval_forward.1} parent=47 // pred_fallthru
          _
        // Predicated region
        $region65: #{retrieval_forward.1} parent=47 // pred_check
          %p990 = pneg %p216
        $region66: #{retrieval_forward.1} parent=47 // pred_check_branch
          %992 = sbr.rel (%p990) target = $region68
        $region67: #{retrieval_forward.1} parent=47 // pred_region
          %994 = dma.done [#allocation10], 16
        $region68: #{retrieval_forward.1} parent=47 // pred_fallthru
          _
        %995 = sfence
      $region48: #{retrieval_forward.1} parent=5 // pred_fallthru
        _
      %p996 = scmp.le.s32.totalorder 2, %s20
      // Predicated region
      $region69: #{retrieval_forward.1} parent=5 // pred_check
        %p997 = pneg %p996
      $region70: #{retrieval_forward.1} parent=5 // pred_check_branch
        %999 = sbr.rel (%p997) target = $region72
      $region71: #{retrieval_forward.1} parent=5 // pred_region
        %s1000 = ssub.s32 %s20, 2
        // Predicated region
        $region73: #{retrieval_forward.1} parent=71 // pred_check
          %p1001 = pneg %p201
        $region74: #{retrieval_forward.1} parent=71 // pred_check_branch
          %1003 = sbr.rel (%p1001) target = $region76
        $region75: #{retrieval_forward.1} parent=71 // pred_region
          %s1004 = sand.u32 %s186, 1
          %s1005 = scalar_lea.sflag [#allocation9], %s1004
          %s1006 = sand.u32 %s186, 1
          %s1007 = smul.addr %s1006, 8
          %s1008 = scalar_lea.vmem [#allocation8], %s1007
          %1010 = dma.done %s1005, 128
        $region76: #{retrieval_forward.1} parent=71 // pred_fallthru
          _
      $region72: #{retrieval_forward.1} parent=5 // pred_fallthru
        _
    $region6: #{retrieval_forward.1} parent=1 // loop_footer
      %s24 = sadd.s32 1, %s20
    $region7: #{retrieval_forward.1} parent=1 // loop_footer_branch
      %19 = sbr.rel target = $region3
    $region8: #{retrieval_forward.1} parent=1 // loop_exit
      _
    %1011 = vsyncpa [#allocation9], 1
    %s1012 = scalar_lea.sflag [#allocation9], 1
    %1013 = vsyncpa %s1012, 1
    %1014 = vsyncpa [#allocation10], 1
    %s1015 = scalar_lea.sflag [#allocation10], 1
    %1016 = vsyncpa %s1015, 1

</llo_original>
